<compile_context>
chip_gen: v5e
topology: v5e:2x2
jax: 0.10.0
libtpu: 0.0.40
codegen_flags: <defaults>
</compile_context>

<pallas_src>
import jax
import jax.numpy as jnp
from jax.experimental import pallas as pl
from jax.experimental.pallas import tpu as pltpu

# ---- small, module-consistent synthetic config ----
BATCH = 2
SEQ = 8
BERT_DIM = 32      # stands in for config.bert_dim (=768)
NUM_REL = 4        # config.num_rel
H = 8              # ScaledDotProductAttention h=8 (as in the module)
D_K = BERT_DIM     # per-head d_k == d_model (module uses d_k=768=d_model)
D_V = BERT_DIM
VOCAB = 100

HDK = H * D_K
HDV = H * D_V
HS_PAD = ((D_K + 127) // 128) * 128   # 128-lane-aligned per-head stride (== d_k at real config)
OUT_PAD = 128                         # lane-dense fused output slab width
SUB_OFF = 0                           # lanes 0,1        -> sub head / sub tail
OBJ_OFF = 2                           # lanes 2..2+2*NR  -> obj heads / obj tails


def casrel_kernel(enc_ref, pool_ref, wqkv_ref, bqkv_ref, wo_ref, bo_ref,
                  wsub_ref, wobj_ref, bheads_ref, out_ref, enc2_ref, acc_ref):
    h = pl.program_id(1)

    # ---- init (once per batch): zero fc_o accumulator, build pooled residual input ----
    @pl.when(h == 0)
    def _():
        acc_ref[...] = jnp.zeros_like(acc_ref)
        enc_bf = enc_ref[...].astype(jnp.bfloat16)
        # get_objs_for_specific_sub: subject-span mean pooling (1/sub_len baked into pool vec)
        pooled = jnp.dot(pool_ref[0].astype(jnp.bfloat16), enc_bf,
                         preferred_element_type=jnp.float32)            # [1, D]
        enc2_ref[...] = (enc_ref[...] + pooled).astype(jnp.bfloat16)    # [S, D]

    # ---- this head's fused q/k/v projection (one matmul, 128-lane-aligned head slices) ----
    enc2_bf = enc2_ref[...]
    qkv = jnp.dot(enc2_bf, wqkv_ref[0],
                  preferred_element_type=jnp.float32) + bqkv_ref[0]     # [S, 3*HS_PAD] f32
    qkv_bf = qkv.astype(jnp.bfloat16)                                   # single cast

    q_h = qkv_bf[:, 0:HS_PAD]
    k_h = qkv_bf[:, HS_PAD:2 * HS_PAD]
    v_h = qkv_bf[:, 2 * HS_PAD:3 * HS_PAD]

    scale = 1.0 / jnp.sqrt(jnp.float32(D_K))
    # Q @ K^T (contracting (1,1)); padded lanes are zero so result is exact.
    s = jax.lax.dot_general(q_h, k_h, (((1,), (1,)), ((), ())),
                            preferred_element_type=jnp.float32) * scale  # [S, S]
    s = s - jnp.max(s, axis=-1, keepdims=True)
    p = jnp.exp(s)
    p = p * pl.reciprocal(jnp.sum(p, axis=-1, keepdims=True), approx=True)

    o_h = jnp.dot(p.astype(jnp.bfloat16), v_h,
                  preferred_element_type=jnp.float32)                    # [S, HS_PAD]
    # concat-heads -> fc_o expressed as per-head accumulation into an f32 accumulator
    acc_ref[...] += jnp.dot(o_h.astype(jnp.bfloat16), wo_ref[0],
                            preferred_element_type=jnp.float32)          # [S, D]

    # ---- finalize (last head): fused, lane-dense output heads, single unmasked store ----
    @pl.when(h == pl.num_programs(1) - 1)
    def _():
        attn_bf = (acc_ref[...] + bo_ref[...]).astype(jnp.bfloat16)      # [S, D]
        enc_bf = enc_ref[...].astype(jnp.bfloat16)
        # lanes [0,2): sub heads/tails linear on enc; lanes [2, 2+2*NR): obj heads/tails on attn
        logits = (jnp.dot(enc_bf, wsub_ref[...], preferred_element_type=jnp.float32)
                  + jnp.dot(attn_bf, wobj_ref[...], preferred_element_type=jnp.float32)
                  + bheads_ref[...])                                      # [S, OUT_PAD]
        out_ref[...] = pl.reciprocal(1.0 + jnp.exp(-logits), approx=False)


def make_params(key):
    ks = jax.random.split(key, 16)

    def w(k, shape, s=0.05):
        return (s * jax.random.normal(k, shape)).astype(jnp.bfloat16)    # weights in bf16

    return {
        'embedding': jax.random.normal(ks[0], (VOCAB, BERT_DIM)).astype(jnp.float32),
        'w_sub_h': w(ks[1], (BERT_DIM, 1)),  'b_sub_h': jnp.zeros((1, 1), jnp.float32),
        'w_sub_t': w(ks[2], (BERT_DIM, 1)),  'b_sub_t': jnp.zeros((1, 1), jnp.float32),
        'w_q': w(ks[3], (BERT_DIM, HDK)),
        'b_q': (0.05 * jax.random.normal(ks[4], (1, HDK))).astype(jnp.float32),
        'w_k': w(ks[5], (BERT_DIM, HDK)),
        'b_k': (0.05 * jax.random.normal(ks[6], (1, HDK))).astype(jnp.float32),
        'w_v': w(ks[7], (BERT_DIM, HDV)),
        'b_v': (0.05 * jax.random.normal(ks[8], (1, HDV))).astype(jnp.float32),
        'w_o': w(ks[9], (HDV, BERT_DIM)),
        'b_o': (0.05 * jax.random.normal(ks[10], (1, BERT_DIM))).astype(jnp.float32),
        'w_obj_h': w(ks[11], (BERT_DIM, NUM_REL)), 'b_obj_h': jnp.zeros((1, NUM_REL), jnp.float32),
        'w_obj_t': w(ks[12], (BERT_DIM, NUM_REL)), 'b_obj_t': jnp.zeros((1, NUM_REL), jnp.float32),
    }


def _prepare_weights(p):
    D, NR = BERT_DIM, NUM_REL

    # per-head, 128-lane-aligned fused q/k/v weights -> [H, D, 3*HS_PAD] (zero-padded lanes)
    def head_major(w_):                                   # [D, H*dk] -> [H, D, HS_PAD]
        hw = w_.reshape(D, H, D_K).transpose(1, 0, 2)
        return jnp.pad(hw, ((0, 0), (0, 0), (0, HS_PAD - D_K)))

    w_qkv_heads = jnp.concatenate(
        [head_major(p['w_q']), head_major(p['w_k']), head_major(p['w_v'])],
        axis=-1).astype(jnp.bfloat16)                     # [H, D, 3*HS_PAD]

    def head_bias(b_):                                    # [1, H*dk] -> [H, 1, HS_PAD]
        hb = b_.reshape(1, H, D_K).transpose(1, 0, 2)
        return jnp.pad(hb, ((0, 0), (0, 0), (0, HS_PAD - D_K)))

    b_qkv_heads = jnp.concatenate(
        [head_bias(p['b_q']), head_bias(p['b_k']), head_bias(p['b_v'])],
        axis=-1).astype(jnp.float32)                      # [H, 1, 3*HS_PAD]

    # fc_o rows, head-tiled, rows padded to HS_PAD with zeros -> [H, HS_PAD, D]
    w_o_heads = jnp.pad(p['w_o'].reshape(H, D_V, D),
                        ((0, 0), (0, HS_PAD - D_V), (0, 0))).astype(jnp.bfloat16)

    # fused + lane-padded output heads (single 128-wide output slab)
    w_sub = jnp.zeros((D, OUT_PAD), jnp.bfloat16)
    w_sub = w_sub.at[:, SUB_OFF:SUB_OFF + 1].set(p['w_sub_h'])
    w_sub = w_sub.at[:, SUB_OFF + 1:SUB_OFF + 2].set(p['w_sub_t'])

    w_obj = jnp.zeros((D, OUT_PAD), jnp.bfloat16)
    w_obj = w_obj.at[:, OBJ_OFF:OBJ_OFF + NR].set(p['w_obj_h'])
    w_obj = w_obj.at[:, OBJ_OFF + NR:OBJ_OFF + 2 * NR].set(p['w_obj_t'])

    b_heads = jnp.zeros((1, OUT_PAD), jnp.float32)
    b_heads = b_heads.at[:, SUB_OFF:SUB_OFF + 1].set(p['b_sub_h'])
    b_heads = b_heads.at[:, SUB_OFF + 1:SUB_OFF + 2].set(p['b_sub_t'])
    b_heads = b_heads.at[:, OBJ_OFF:OBJ_OFF + NR].set(p['b_obj_h'])
    b_heads = b_heads.at[:, OBJ_OFF + NR:OBJ_OFF + 2 * NR].set(p['b_obj_t'])

    return w_qkv_heads, b_qkv_heads, w_o_heads, p['b_o'], w_sub, w_obj, b_heads


def _cost_estimate():
    flops = 2 * BATCH * H * (SEQ * BERT_DIM * 3 * HS_PAD      # per-head fused qkv projection
                             + 2 * SEQ * SEQ * HS_PAD         # QK^T and P@V
                             + SEQ * HS_PAD * BERT_DIM)       # per-head fc_o accumulation
    flops += 2 * BATCH * (SEQ * BERT_DIM                      # subject-span pooling
                          + 2 * SEQ * BERT_DIM * OUT_PAD)     # fused output heads
    transcendentals = BATCH * H * SEQ * SEQ + BATCH * SEQ * OUT_PAD
    bytes_accessed = (BATCH * SEQ * BERT_DIM * 4
                      + BATCH * SEQ * 4
                      + BATCH * (H * BERT_DIM * 3 * HS_PAD * 2
                                 + H * 3 * HS_PAD * 4
                                 + H * HS_PAD * BERT_DIM * 2)
                      + BERT_DIM * 4
                      + 2 * BERT_DIM * OUT_PAD * 2 + OUT_PAD * 4
                      + BATCH * SEQ * OUT_PAD * 4)
    return pl.CostEstimate(flops=flops, transcendentals=transcendentals,
                           bytes_accessed=bytes_accessed)


@jax.jit
def casrel_forward(input_ids, mask, sub_head2tail, sub_len, params):
    # TODO(synk): replace with a real BERT encoder; deterministic embedding lookup stands in.
    enc = params['embedding'][input_ids].astype(jnp.float32)             # [B, S, D]
    enc_flat = enc.reshape(BATCH * SEQ, BERT_DIM)

    # per-batch subject-span mean-pool weights (1/sub_len baked in; clamp zero-length spans)
    safe_len = jnp.where(sub_len > 0, sub_len, jnp.ones_like(sub_len))
    pool_vec = (sub_head2tail / safe_len).reshape(BATCH, 1, SEQ).astype(jnp.float32)

    w_qkv_heads, b_qkv_heads, w_o_heads, b_o, w_sub, w_obj, b_heads = _prepare_weights(params)

    grid_spec = pltpu.PrefetchScalarGridSpec(
        num_scalar_prefetch=0,
        grid=(BATCH, H),                                   # batch parallel, heads streamed
        in_specs=[
            pl.BlockSpec((SEQ, BERT_DIM), lambda b, h: (b, 0)),              # enc rows of batch b
            pl.BlockSpec((1, 1, SEQ), lambda b, h: (b, 0, 0)),               # pooling weights
            pl.BlockSpec((1, BERT_DIM, 3 * HS_PAD), lambda b, h: (h, 0, 0)),  # head-h fused qkv W
            pl.BlockSpec((1, 1, 3 * HS_PAD), lambda b, h: (h, 0, 0)),        # head-h fused qkv b
            pl.BlockSpec((1, HS_PAD, BERT_DIM), lambda b, h: (h, 0, 0)),     # head-h fc_o rows
            pl.BlockSpec((1, BERT_DIM), lambda b, h: (0, 0)),                # b_o
            pl.BlockSpec((BERT_DIM, OUT_PAD), lambda b, h: (0, 0)),          # w_sub (fused slab)
            pl.BlockSpec((BERT_DIM, OUT_PAD), lambda b, h: (0, 0)),          # w_obj (fused slab)
            pl.BlockSpec((1, OUT_PAD), lambda b, h: (0, 0)),                 # b_heads
        ],
        out_specs=pl.BlockSpec((SEQ, OUT_PAD), lambda b, h: (b, 0)),
        scratch_shapes=[
            pltpu.VMEM((SEQ, BERT_DIM), jnp.bfloat16),     # enc + pooled residual (cached)
            pltpu.VMEM((SEQ, BERT_DIM), jnp.float32),      # fc_o accumulator across heads
        ],
    )

    out = pl.pallas_call(
        casrel_kernel,
        out_shape=jax.ShapeDtypeStruct((BATCH * SEQ, OUT_PAD), jnp.float32),
        grid_spec=grid_spec,
        compiler_params=pltpu.CompilerParams(
            dimension_semantics=("parallel", "arbitrary"),
            vmem_limit_bytes=32 * 1024 * 1024),
        cost_estimate=_cost_estimate(),
    )(enc_flat, pool_vec, w_qkv_heads, b_qkv_heads, w_o_heads, b_o, w_sub, w_obj, b_heads)

    out3 = out.reshape(BATCH, SEQ, OUT_PAD)
    return {
        'pred_sub_heads': out3[..., SUB_OFF:SUB_OFF + 1],
        'pred_sub_tails': out3[..., SUB_OFF + 1:SUB_OFF + 2],
        'pred_obj_heads': out3[..., OBJ_OFF:OBJ_OFF + NUM_REL],
        'pred_obj_tails': out3[..., OBJ_OFF + NUM_REL:OBJ_OFF + 2 * NUM_REL],
        'mask': mask,
    }


if __name__ == "__main__":
    key = jax.random.PRNGKey(0)
    pkey, ikey = jax.random.split(key)
    params = make_params(pkey)

    input_ids = jax.random.randint(ikey, (BATCH, SEQ), 0, VOCAB)
    mask = jnp.ones((BATCH, SEQ), jnp.float32)
    # subject span: positions 2..4 inclusive -> length 3
    sub_head2tail = jnp.zeros((BATCH, SEQ), jnp.float32).at[:, 2:5].set(1.0)
    sub_len = jnp.full((BATCH, 1), 3.0, jnp.float32)

    out = casrel_forward(input_ids, mask, sub_head2tail, sub_len, params)
    jax.block_until_ready(out)

    assert out['pred_sub_heads'].shape == (BATCH, SEQ, 1)
    assert out['pred_sub_tails'].shape == (BATCH, SEQ, 1)
    assert out['pred_obj_heads'].shape == (BATCH, SEQ, NUM_REL)
    assert out['pred_obj_tails'].shape == (BATCH, SEQ, NUM_REL)
    assert bool(jnp.all(jnp.isfinite(out['pred_obj_heads'])))
    assert bool(jnp.all((out['pred_sub_heads'] >= 0) & (out['pred_sub_heads'] <= 1)))
    print("KERNEL_OK")
</pallas_src>

<mosaic_0001>
module attributes {stable_mosaic.version = 11 : i64} {
  func.func @casrel_kernel(%arg0: i32, %arg1: i32, %arg2: memref<8x32xf32, #tpu.memory_space<vmem>>, %arg3: memref<1x1x8xf32, #tpu.memory_space<vmem>>, %arg4: memref<1x32x384xbf16, #tpu.memory_space<vmem>>, %arg5: memref<1x1x384xf32, #tpu.memory_space<vmem>>, %arg6: memref<1x128x32xbf16, #tpu.memory_space<vmem>>, %arg7: memref<1x32xf32, #tpu.memory_space<vmem>>, %arg8: memref<32x128xbf16, #tpu.memory_space<vmem>>, %arg9: memref<32x128xbf16, #tpu.memory_space<vmem>>, %arg10: memref<1x128xf32, #tpu.memory_space<vmem>>, %arg11: memref<8x128xf32, #tpu.memory_space<vmem>>, %arg12: memref<8x32xbf16, #tpu.memory_space<vmem>>, %arg13: memref<8x32xf32, #tpu.memory_space<vmem>>) attributes {dimension_semantics = [#tpu.dimension_semantics<parallel>, #tpu.dimension_semantics<arbitrary>], iteration_bounds = array<i64: 2, 8>, scalar_prefetch = 0 : i64, scratch_operands = 2 : i64, tpu.core_type = #tpu.core_type<tc>, window_params = [{transform_indices = @transform_0, window_bounds = array<i64: 8, 32>}, {transform_indices = @transform_1, window_bounds = array<i64: 1, 1, 8>}, {transform_indices = @transform_2, window_bounds = array<i64: 1, 32, 384>}, {transform_indices = @transform_3, window_bounds = array<i64: 1, 1, 384>}, {transform_indices = @transform_4, window_bounds = array<i64: 1, 128, 32>}, {pipeline_mode = #tpu.pipeline_mode<synchronous>, transform_indices = @transform_5, window_bounds = array<i64: 1, 32>}, {pipeline_mode = #tpu.pipeline_mode<synchronous>, transform_indices = @transform_6, window_bounds = array<i64: 32, 128>}, {pipeline_mode = #tpu.pipeline_mode<synchronous>, transform_indices = @transform_7, window_bounds = array<i64: 32, 128>}, {pipeline_mode = #tpu.pipeline_mode<synchronous>, transform_indices = @transform_8, window_bounds = array<i64: 1, 128>}, {transform_indices = @transform_9, window_bounds = array<i64: 8, 128>}]} {
    %c0_i32 = arith.constant 0 : i32
    %0 = arith.cmpi eq, %arg1, %c0_i32 : i32
    %1 = arith.extui %0 : i1 to i32
    %c0_i32_0 = arith.constant 0 : i32
    %2 = arith.cmpi ne, %1, %c0_i32_0 : i32
    scf.if %2 {
      %cst_23 = arith.constant 0.000000e+00 : f32
      %42 = vector.broadcast %cst_23 : f32 to vector<8x32xf32>
      %c0_24 = arith.constant 0 : index
      %c0_25 = arith.constant 0 : index
      %43 = vector.load %arg13[%c0_24, %c0_25] : memref<8x32xf32, #tpu.memory_space<vmem>>, vector<8x32xf32>
      tpu.vector_store %arg13[%c0_24, %c0_25], %42 {strides = array<i32>} : memref<8x32xf32, #tpu.memory_space<vmem>>, vector<8x32xf32>,
      %c0_26 = arith.constant 0 : index
      %c0_27 = arith.constant 0 : index
      %44 = vector.load %arg2[%c0_26, %c0_27] : memref<8x32xf32, #tpu.memory_space<vmem>>, vector<8x32xf32>
      %45 = arith.truncf %44 : vector<8x32xf32> to vector<8x32xbf16>
      %c0_28 = arith.constant 0 : index
      %c0_29 = arith.constant 0 : index
      %c0_30 = arith.constant 0 : index
      %46 = vector.load %arg3[%c0_28, %c0_29, %c0_30] : memref<1x1x8xf32, #tpu.memory_space<vmem>>, vector<1x1x8xf32>
      %47 = vector.shape_cast %46 : vector<1x1x8xf32> to vector<1x8xf32>
      %48 = arith.truncf %47 : vector<1x8xf32> to vector<1x8xbf16>
      %cst_31 = arith.constant dense<0.000000e+00> : vector<1x32xf32>
      %49 = tpu.matmul %48, %45, %cst_31 {dimension_numbers = #tpu.dot_dimension_numbers<[1], [0], [0], [1], [0, 0, 1, 1], [], []>} : vector<1x8xbf16>, vector<8x32xbf16>, vector<1x32xf32> -> vector<1x32xf32>
      %c0_32 = arith.constant 0 : index
      %c0_33 = arith.constant 0 : index
      %50 = vector.load %arg2[%c0_32, %c0_33] : memref<8x32xf32, #tpu.memory_space<vmem>>, vector<8x32xf32>
      %51 = vector.broadcast %49 : vector<1x32xf32> to vector<8x32xf32>
      %52 = arith.addf %50, %51 : vector<8x32xf32>
      %53 = arith.truncf %52 : vector<8x32xf32> to vector<8x32xbf16>
      %c0_34 = arith.constant 0 : index
      %c0_35 = arith.constant 0 : index
      %54 = vector.load %arg12[%c0_34, %c0_35] : memref<8x32xbf16, #tpu.memory_space<vmem>>, vector<8x32xbf16>
      tpu.vector_store %arg12[%c0_34, %c0_35], %53 {strides = array<i32>} : memref<8x32xbf16, #tpu.memory_space<vmem>>, vector<8x32xbf16>,
    } else {
    }
    %c0 = arith.constant 0 : index
    %c0_1 = arith.constant 0 : index
    %3 = vector.load %arg12[%c0, %c0_1] : memref<8x32xbf16, #tpu.memory_space<vmem>>, vector<8x32xbf16>
    %c0_2 = arith.constant 0 : index
    %c0_3 = arith.constant 0 : index
    %c0_4 = arith.constant 0 : index
    %4 = vector.load %arg4[%c0_2, %c0_3, %c0_4] : memref<1x32x384xbf16, #tpu.memory_space<vmem>>, vector<1x32x384xbf16>
    %5 = vector.shape_cast %4 : vector<1x32x384xbf16> to vector<32x384xbf16>
    %cst = arith.constant dense<0.000000e+00> : vector<8x384xf32>
    %6 = tpu.matmul %3, %5, %cst {dimension_numbers = #tpu.dot_dimension_numbers<[1], [0], [0], [1], [0, 0, 1, 1], [], []>} : vector<8x32xbf16>, vector<32x384xbf16>, vector<8x384xf32> -> vector<8x384xf32>
    %c0_5 = arith.constant 0 : index
    %c0_6 = arith.constant 0 : index
    %c0_7 = arith.constant 0 : index
    %7 = vector.load %arg5[%c0_5, %c0_6, %c0_7] : memref<1x1x384xf32, #tpu.memory_space<vmem>>, vector<1x1x384xf32>
    %8 = vector.shape_cast %7 : vector<1x1x384xf32> to vector<1x384xf32>
    %9 = vector.broadcast %8 : vector<1x384xf32> to vector<8x384xf32>
    %10 = arith.addf %6, %9 : vector<8x384xf32>
    %11 = arith.truncf %10 : vector<8x384xf32> to vector<8x384xbf16>
    %12 = vector.extract_strided_slice %11 {offsets = [0, 0], sizes = [8, 128], strides = [1, 1]} : vector<8x384xbf16> to vector<8x128xbf16>
    %13 = vector.extract_strided_slice %11 {offsets = [0, 128], sizes = [8, 128], strides = [1, 1]} : vector<8x384xbf16> to vector<8x128xbf16>
    %14 = vector.extract_strided_slice %11 {offsets = [0, 256], sizes = [8, 128], strides = [1, 1]} : vector<8x384xbf16> to vector<8x128xbf16>
    %cst_8 = arith.constant 3.200000e+01 : f32
    %15 = math.sqrt %cst_8 : f32
    %cst_9 = arith.constant 1.000000e+00 : f32
    %16 = arith.divf %cst_9, %15 : f32
    %cst_10 = arith.constant dense<0.000000e+00> : vector<8x8xf32>
    %17 = tpu.matmul %12, %13, %cst_10 {dimension_numbers = #tpu.dot_dimension_numbers<[1], [1], [0], [0], [0, 0, 1, 0], [], []>} : vector<8x128xbf16>, vector<8x128xbf16>, vector<8x8xf32> -> vector<8x8xf32>
    %18 = vector.broadcast %16 : f32 to vector<8x8xf32>
    %19 = arith.mulf %17, %18 : vector<8x8xf32>
    %cst_11 = arith.constant dense<0xFF800000> : vector<8xf32>
    %20 = vector.multi_reduction <maximumf>, %19, %cst_11 [1] : vector<8x8xf32> to vector<8xf32>
    %21 = vector.shape_cast %20 : vector<8xf32> to vector<8x1xf32>
    %22 = vector.broadcast %21 : vector<8x1xf32> to vector<8x8xf32>
    %23 = arith.subf %19, %22 : vector<8x8xf32>
    %24 = math.exp %23 : vector<8x8xf32>
    %cst_12 = arith.constant dense<0.000000e+00> : vector<8xf32>
    %25 = vector.multi_reduction <add>, %24, %cst_12 [1] : vector<8x8xf32> to vector<8xf32>
    %26 = vector.shape_cast %25 : vector<8xf32> to vector<8x1xf32>
    %27 = tpu.reciprocal %26 {approx = true} : vector<8x1xf32> -> vector<8x1xf32>
    %28 = vector.broadcast %27 : vector<8x1xf32> to vector<8x8xf32>
    %29 = arith.mulf %24, %28 : vector<8x8xf32>
    %30 = arith.truncf %29 : vector<8x8xf32> to vector<8x8xbf16>
    %cst_13 = arith.constant dense<0.000000e+00> : vector<8x128xf32>
    %31 = tpu.matmul %30, %14, %cst_13 {dimension_numbers = #tpu.dot_dimension_numbers<[1], [0], [0], [1], [0, 0, 1, 1], [], []>} : vector<8x8xbf16>, vector<8x128xbf16>, vector<8x128xf32> -> vector<8x128xf32>
    %c0_14 = arith.constant 0 : index
    %c0_15 = arith.constant 0 : index
    %32 = vector.load %arg13[%c0_14, %c0_15] : memref<8x32xf32, #tpu.memory_space<vmem>>, vector<8x32xf32>
    %33 = arith.truncf %31 : vector<8x128xf32> to vector<8x128xbf16>
    %c0_16 = arith.constant 0 : index
    %c0_17 = arith.constant 0 : index
    %c0_18 = arith.constant 0 : index
    %34 = vector.load %arg6[%c0_16, %c0_17, %c0_18] : memref<1x128x32xbf16, #tpu.memory_space<vmem>>, vector<1x128x32xbf16>
    %35 = vector.shape_cast %34 : vector<1x128x32xbf16> to vector<128x32xbf16>
    %cst_19 = arith.constant dense<0.000000e+00> : vector<8x32xf32>
    %36 = tpu.matmul %33, %35, %cst_19 {dimension_numbers = #tpu.dot_dimension_numbers<[1], [0], [0], [1], [0, 0, 1, 1], [], []>} : vector<8x128xbf16>, vector<128x32xbf16>, vector<8x32xf32> -> vector<8x32xf32>
    %37 = arith.addf %32, %36 : vector<8x32xf32>
    %c0_20 = arith.constant 0 : index
    %c0_21 = arith.constant 0 : index
    %38 = vector.load %arg13[%c0_20, %c0_21] : memref<8x32xf32, #tpu.memory_space<vmem>>, vector<8x32xf32>
    tpu.vector_store %arg13[%c0_20, %c0_21], %37 {strides = array<i32>} : memref<8x32xf32, #tpu.memory_space<vmem>>, vector<8x32xf32>,
    %c7_i32 = arith.constant 7 : i32
    %39 = arith.cmpi eq, %arg1, %c7_i32 : i32
    %40 = arith.extui %39 : i1 to i32
    %c0_i32_22 = arith.constant 0 : i32
    %41 = arith.cmpi ne, %40, %c0_i32_22 : i32
    scf.if %41 {
      %c0_23 = arith.constant 0 : index
      %c0_24 = arith.constant 0 : index
      %42 = vector.load %arg13[%c0_23, %c0_24] : memref<8x32xf32, #tpu.memory_space<vmem>>, vector<8x32xf32>
      %c0_25 = arith.constant 0 : index
      %c0_26 = arith.constant 0 : index
      %43 = vector.load %arg7[%c0_25, %c0_26] : memref<1x32xf32, #tpu.memory_space<vmem>>, vector<1x32xf32>
      %44 = vector.broadcast %43 : vector<1x32xf32> to vector<8x32xf32>
      %45 = arith.addf %42, %44 : vector<8x32xf32>
      %46 = arith.truncf %45 : vector<8x32xf32> to vector<8x32xbf16>
      %c0_27 = arith.constant 0 : index
      %c0_28 = arith.constant 0 : index
      %47 = vector.load %arg2[%c0_27, %c0_28] : memref<8x32xf32, #tpu.memory_space<vmem>>, vector<8x32xf32>
      %48 = arith.truncf %47 : vector<8x32xf32> to vector<8x32xbf16>
      %c0_29 = arith.constant 0 : index
      %c0_30 = arith.constant 0 : index
      %49 = vector.load %arg8[%c0_29, %c0_30] : memref<32x128xbf16, #tpu.memory_space<vmem>>, vector<32x128xbf16>
      %cst_31 = arith.constant dense<0.000000e+00> : vector<8x128xf32>
      %50 = tpu.matmul %48, %49, %cst_31 {dimension_numbers = #tpu.dot_dimension_numbers<[1], [0], [0], [1], [0, 0, 1, 1], [], []>} : vector<8x32xbf16>, vector<32x128xbf16>, vector<8x128xf32> -> vector<8x128xf32>
      %c0_32 = arith.constant 0 : index
      %c0_33 = arith.constant 0 : index
      %51 = vector.load %arg9[%c0_32, %c0_33] : memref<32x128xbf16, #tpu.memory_space<vmem>>, vector<32x128xbf16>
      %cst_34 = arith.constant dense<0.000000e+00> : vector<8x128xf32>
      %52 = tpu.matmul %46, %51, %cst_34 {dimension_numbers = #tpu.dot_dimension_numbers<[1], [0], [0], [1], [0, 0, 1, 1], [], []>} : vector<8x32xbf16>, vector<32x128xbf16>, vector<8x128xf32> -> vector<8x128xf32>
      %53 = arith.addf %50, %52 : vector<8x128xf32>
      %c0_35 = arith.constant 0 : index
      %c0_36 = arith.constant 0 : index
      %54 = vector.load %arg10[%c0_35, %c0_36] : memref<1x128xf32, #tpu.memory_space<vmem>>, vector<1x128xf32>
      %55 = vector.broadcast %54 : vector<1x128xf32> to vector<8x128xf32>
      %56 = arith.addf %53, %55 : vector<8x128xf32>
      %cst_37 = arith.constant 0.000000e+00 : f32
      %57 = vector.broadcast %cst_37 : f32 to vector<8x128xf32>
      %58 = arith.subf %57, %56 : vector<8x128xf32>
      %59 = math.exp %58 : vector<8x128xf32>
      %cst_38 = arith.constant 1.000000e+00 : f32
      %60 = vector.broadcast %cst_38 : f32 to vector<8x128xf32>
      %61 = arith.addf %60, %59 : vector<8x128xf32>
      %62 = tpu.reciprocal %61 : vector<8x128xf32> -> vector<8x128xf32>
      %c0_39 = arith.constant 0 : index
      %c0_40 = arith.constant 0 : index
      %63 = vector.load %arg11[%c0_39, %c0_40] : memref<8x128xf32, #tpu.memory_space<vmem>>, vector<8x128xf32>
      tpu.vector_store %arg11[%c0_39, %c0_40], %62 {strides = array<i32>} : memref<8x128xf32, #tpu.memory_space<vmem>>, vector<8x128xf32>,
    } else {
    }
    return
  }
  func.func @transform_0(%arg0: i32, %arg1: i32) -> (i32, i32) {
    %c0_i32 = arith.constant 0 : i32
    %c0_i32_0 = arith.constant 0 : i32
    return %arg0, %c0_i32 : i32, i32
  }
  func.func @transform_1(%arg0: i32, %arg1: i32) -> (i32, i32, i32) {
    %c0_i32 = arith.constant 0 : i32
    %c0_i32_0 = arith.constant 0 : i32
    %c0_i32_1 = arith.constant 0 : i32
    return %arg0, %c0_i32, %c0_i32_0 : i32, i32, i32
  }
  func.func @transform_2(%arg0: i32, %arg1: i32) -> (i32, i32, i32) {
    %c0_i32 = arith.constant 0 : i32
    %c0_i32_0 = arith.constant 0 : i32
    %c0_i32_1 = arith.constant 0 : i32
    return %arg1, %c0_i32, %c0_i32_0 : i32, i32, i32
  }
  func.func @transform_3(%arg0: i32, %arg1: i32) -> (i32, i32, i32) {
    %c0_i32 = arith.constant 0 : i32
    %c0_i32_0 = arith.constant 0 : i32
    %c0_i32_1 = arith.constant 0 : i32
    return %arg1, %c0_i32, %c0_i32_0 : i32, i32, i32
  }
  func.func @transform_4(%arg0: i32, %arg1: i32) -> (i32, i32, i32) {
    %c0_i32 = arith.constant 0 : i32
    %c0_i32_0 = arith.constant 0 : i32
    %c0_i32_1 = arith.constant 0 : i32
    return %arg1, %c0_i32, %c0_i32_0 : i32, i32, i32
  }
  func.func @transform_5(%arg0: i32, %arg1: i32) -> (i32, i32) {
    %c0_i32 = arith.constant 0 : i32
    %c0_i32_0 = arith.constant 0 : i32
    %c0_i32_1 = arith.constant 0 : i32
    return %c0_i32, %c0_i32_0 : i32, i32
  }
  func.func @transform_6(%arg0: i32, %arg1: i32) -> (i32, i32) {
    %c0_i32 = arith.constant 0 : i32
    %c0_i32_0 = arith.constant 0 : i32
    %c0_i32_1 = arith.constant 0 : i32
    return %c0_i32, %c0_i32_0 : i32, i32
  }
  func.func @transform_7(%arg0: i32, %arg1: i32) -> (i32, i32) {
    %c0_i32 = arith.constant 0 : i32
    %c0_i32_0 = arith.constant 0 : i32
    %c0_i32_1 = arith.constant 0 : i32
    return %c0_i32, %c0_i32_0 : i32, i32
  }
  func.func @transform_8(%arg0: i32, %arg1: i32) -> (i32, i32) {
    %c0_i32 = arith.constant 0 : i32
    %c0_i32_0 = arith.constant 0 : i32
    %c0_i32_1 = arith.constant 0 : i32
    return %c0_i32, %c0_i32_0 : i32, i32
  }
  func.func @transform_9(%arg0: i32, %arg1: i32) -> (i32, i32) {
    %c0_i32 = arith.constant 0 : i32
    %c0_i32_0 = arith.constant 0 : i32
    return %arg0, %c0_i32 : i32, i32
  }
}

</mosaic_0001>

<llo_original>
// kernel: casrel_forward.1
$region0: #{casrel_forward.1}
  #allocation0 [shape = 'u32[]', space=smem, size = 0x4, offset = 0x4, fixed_abs, tag = 'smem constant byte address 0x4 - core index']
  #allocation1 [shape = 'u32[72,128]{1,0:T(1,128)}', space=vmem, size = 0x9000, scoped, tag = 'internal scratch']
  #allocation2 [shape = 'bf16[8,32]{1,0:T(8,128)(2,1)}', space=vmem, size = 0x800, scoped, tag = 'scratch operand']
  #allocation3 [shape = 'f32[8,32]{1,0:T(8,128)}', space=vmem, size = 0x1000, scoped, tag = 'scratch operand']
  %s0 = inlined_call_operand.vmem [shape: f32[16,32], index: 0, kind: input, shape index: {}]
  %s1 = inlined_call_operand.vmem [shape: f32[2,1,8], index: 1, kind: input, shape index: {}]
  %s2 = inlined_call_operand.vmem [shape: bf16[8,32,384], index: 2, kind: input, shape index: {}]
  %s3 = inlined_call_operand.vmem [shape: f32[8,1,384], index: 3, kind: input, shape index: {}]
  %s4 = inlined_call_operand.vmem [shape: bf16[8,128,32], index: 4, kind: input, shape index: {}]
  %s5 = inlined_call_operand.vmem [shape: f32[1,32], index: 5, kind: input, shape index: {}]
  %s6 = inlined_call_operand.vmem [shape: bf16[32,128], index: 6, kind: input, shape index: {}]
  %s7 = inlined_call_operand.vmem [shape: bf16[32,128], index: 7, kind: input, shape index: {}]
  %s8 = inlined_call_operand.vmem [shape: f32[1,128], index: 8, kind: input, shape index: {}]
  %s9 = inlined_call_operand.vmem [shape: f32[16,128], index: 9, kind: output, shape index: {}]
  %s10 = sld [smem:[#allocation0]]
  $region77: #{casrel_forward.1} parent=0
    _
  %s12 = ssub.s32 1, %s10
  %s13 = scalar_select 0, %s12, %s10
  loop: start=0, step=1, limit=18
  $region2: #{casrel_forward.1} parent=0 // loop_pre_header
    _
  $region3: #{casrel_forward.1} parent=0 // loop_header
    %s15 = sphi 0, %s19
    %p16 = scmp.ge.s32.totalorder %s15, 18
    %s22 = sphi 0, %s34
    %s23 = sphi 0, %s30
    %s24 = sphi 0, %s22
    %s25 = sphi 0, %s23
    %s26 = sphi 0, %s24
    %s27 = sphi 0, %s25
    %s37 = sphi 0, %s39
    %s40 = sphi 0, %s37
    %s41 = sphi 0, %s40
    %s57 = sphi 0, %s41
    %s63 = sphi 0, %s65
    %s66 = sphi 0, %s63
    %s67 = sphi 0, %s66
    %s83 = sphi 0, %s67
    %s89 = sphi 0, %s91
    %s92 = sphi 0, %s89
    %s93 = sphi 0, %s92
    %s109 = sphi 0, %s93
    %s115 = sphi 0, %s117
    %s118 = sphi 0, %s115
    %s119 = sphi 0, %s118
    %s135 = sphi 0, %s119
    %s141 = sphi 0, %s143
    %s144 = sphi 0, %s141
    %s145 = sphi 0, %s144
    %s161 = sphi 0, %s145
    %s165 = sphi 0, %s165
    %s167 = sphi 0, %s165
    %s168 = sphi 0, %s167
    %s182 = sphi 0, %s168
    %s186 = sphi 0, %s186
    %s188 = sphi 0, %s186
    %s189 = sphi 0, %s188
    %s203 = sphi 0, %s189
    %s207 = sphi 0, %s207
    %s209 = sphi 0, %s207
    %s210 = sphi 0, %s209
    %s224 = sphi 0, %s210
    %s228 = sphi 0, %s228
    %s230 = sphi 0, %s228
    %s231 = sphi 0, %s230
    %s245 = sphi 0, %s231
    %s251 = sphi 0, %s253
    %s254 = sphi 0, %s251
    %s255 = sphi 0, %s254
    %s271 = sphi 0, %s255
  $region4: #{casrel_forward.1} parent=0 // loop_header_branch
    %18 = sbr.rel (%p16) target = $region8
  $region5: #{casrel_forward.1} parent=0 // loop_body
    %s20 = ssub.s32 %s15, 1
    %s21 = ssub.s32 %s15, 2
    %s28 = sadd.s32 1, %s23
    %p29 = scmp.ge.s32.totalorder %s28, 8
    %s30 = scalar_select %p29, 0, %s28
    %s31 = sadd.s32 1, %s22
    %s32 = scalar_select %p29, %s31, %s22
    %p33 = scmp.ge.s32.totalorder %s32, 2
    %s34 = scalar_select %p33, 0, %s32
    %s35 = ssub.s32 %s22, %s34
    %p36 = scmp.eq.s32.totalorder %s35, 0
    %s38 = sadd.s32 %s37, 1
    %s39 = scalar_select %p36, %s37, %s38
    %p42 = pneg %p36
    %p43 = scmp.eq.s32.totalorder %s15, 15
    %p44 = por %p42, %p43
    %p45 = scmp.ne.s32.totalorder %s37, %s40
    %p46 = scmp.eq.s32.totalorder %s15, 0
    %p47 = por %p45, %p46
    %p48 = scmp.ne.s32.totalorder %s37, %s40
    %p49 = scmp.eq.s32.totalorder %s20, 15
    %p50 = por %p48, %p49
    %p51 = scmp.ne.s32.totalorder %s40, %s41
    %p52 = scmp.eq.s32.totalorder %s20, 0
    %p53 = por %p51, %p52
    %p54 = scmp.ne.s32.totalorder %s40, %s41
    %p55 = scmp.eq.s32.totalorder %s21, 15
    %p56 = por %p54, %p55
    %p58 = scmp.ne.s32.totalorder %s41, %s57
    %p59 = scmp.eq.s32.totalorder %s21, 0
    %p60 = por %p58, %p59
    %s61 = ssub.s32 %s22, %s34
    %p62 = scmp.eq.s32.totalorder %s61, 0
    %s64 = sadd.s32 %s63, 1
    %s65 = scalar_select %p62, %s63, %s64
    %p68 = pneg %p62
    %p69 = scmp.eq.s32.totalorder %s15, 15
    %p70 = por %p68, %p69
    %p71 = scmp.ne.s32.totalorder %s63, %s66
    %p72 = scmp.eq.s32.totalorder %s15, 0
    %p73 = por %p71, %p72
    %p74 = scmp.ne.s32.totalorder %s63, %s66
    %p75 = scmp.eq.s32.totalorder %s20, 15
    %p76 = por %p74, %p75
    %p77 = scmp.ne.s32.totalorder %s66, %s67
    %p78 = scmp.eq.s32.totalorder %s20, 0
    %p79 = por %p77, %p78
    %p80 = scmp.ne.s32.totalorder %s66, %s67
    %p81 = scmp.eq.s32.totalorder %s21, 15
    %p82 = por %p80, %p81
    %p84 = scmp.ne.s32.totalorder %s67, %s83
    %p85 = scmp.eq.s32.totalorder %s21, 0
    %p86 = por %p84, %p85
    %s87 = ssub.s32 %s23, %s30
    %p88 = scmp.eq.s32.totalorder %s87, 0
    %s90 = sadd.s32 %s89, 1
    %s91 = scalar_select %p88, %s89, %s90
    %p94 = pneg %p88
    %p95 = scmp.eq.s32.totalorder %s15, 15
    %p96 = por %p94, %p95
    %p97 = scmp.ne.s32.totalorder %s89, %s92
    %p98 = scmp.eq.s32.totalorder %s15, 0
    %p99 = por %p97, %p98
    %p100 = scmp.ne.s32.totalorder %s89, %s92
    %p101 = scmp.eq.s32.totalorder %s20, 15
    %p102 = por %p100, %p101
    %p103 = scmp.ne.s32.totalorder %s92, %s93
    %p104 = scmp.eq.s32.totalorder %s20, 0
    %p105 = por %p103, %p104
    %p106 = scmp.ne.s32.totalorder %s92, %s93
    %p107 = scmp.eq.s32.totalorder %s21, 15
    %p108 = por %p106, %p107
    %p110 = scmp.ne.s32.totalorder %s93, %s109
    %p111 = scmp.eq.s32.totalorder %s21, 0
    %p112 = por %p110, %p111
    %s113 = ssub.s32 %s23, %s30
    %p114 = scmp.eq.s32.totalorder %s113, 0
    %s116 = sadd.s32 %s115, 1
    %s117 = scalar_select %p114, %s115, %s116
    %p120 = pneg %p114
    %p121 = scmp.eq.s32.totalorder %s15, 15
    %p122 = por %p120, %p121
    %p123 = scmp.ne.s32.totalorder %s115, %s118
    %p124 = scmp.eq.s32.totalorder %s15, 0
    %p125 = por %p123, %p124
    %p126 = scmp.ne.s32.totalorder %s115, %s118
    %p127 = scmp.eq.s32.totalorder %s20, 15
    %p128 = por %p126, %p127
    %p129 = scmp.ne.s32.totalorder %s118, %s119
    %p130 = scmp.eq.s32.totalorder %s20, 0
    %p131 = por %p129, %p130
    %p132 = scmp.ne.s32.totalorder %s118, %s119
    %p133 = scmp.eq.s32.totalorder %s21, 15
    %p134 = por %p132, %p133
    %p136 = scmp.ne.s32.totalorder %s119, %s135
    %p137 = scmp.eq.s32.totalorder %s21, 0
    %p138 = por %p136, %p137
    %s139 = ssub.s32 %s23, %s30
    %p140 = scmp.eq.s32.totalorder %s139, 0
    %s142 = sadd.s32 %s141, 1
    %s143 = scalar_select %p140, %s141, %s142
    %p146 = pneg %p140
    %p147 = scmp.eq.s32.totalorder %s15, 15
    %p148 = por %p146, %p147
    %p149 = scmp.ne.s32.totalorder %s141, %s144
    %p150 = scmp.eq.s32.totalorder %s15, 0
    %p151 = por %p149, %p150
    %p152 = scmp.ne.s32.totalorder %s141, %s144
    %p153 = scmp.eq.s32.totalorder %s20, 15
    %p154 = por %p152, %p153
    %p155 = scmp.ne.s32.totalorder %s144, %s145
    %p156 = scmp.eq.s32.totalorder %s20, 0
    %p157 = por %p155, %p156
    %p158 = scmp.ne.s32.totalorder %s144, %s145
    %p159 = scmp.eq.s32.totalorder %s21, 15
    %p160 = por %p158, %p159
    %p162 = scmp.ne.s32.totalorder %s145, %s161
    %p163 = scmp.eq.s32.totalorder %s21, 0
    %p164 = por %p162, %p163
    %s166 = sadd.s32 %s165, 1
    %p169 = scmp.eq.s32.totalorder %s15, 15
    %p170 = scmp.ne.s32.totalorder %s165, %s167
    %p171 = scmp.eq.s32.totalorder %s15, 0
    %p172 = por %p170, %p171
    %p173 = scmp.ne.s32.totalorder %s165, %s167
    %p174 = scmp.eq.s32.totalorder %s20, 15
    %p175 = por %p173, %p174
    %p176 = scmp.ne.s32.totalorder %s167, %s168
    %p177 = scmp.eq.s32.totalorder %s20, 0
    %p178 = por %p176, %p177
    %p179 = scmp.ne.s32.totalorder %s167, %s168
    %p180 = scmp.eq.s32.totalorder %s21, 15
    %p181 = por %p179, %p180
    %p183 = scmp.ne.s32.totalorder %s168, %s182
    %p184 = scmp.eq.s32.totalorder %s21, 0
    %p185 = por %p183, %p184
    %s187 = sadd.s32 %s186, 1
    %p190 = scmp.eq.s32.totalorder %s15, 15
    %p191 = scmp.ne.s32.totalorder %s186, %s188
    %p192 = scmp.eq.s32.totalorder %s15, 0
    %p193 = por %p191, %p192
    %p194 = scmp.ne.s32.totalorder %s186, %s188
    %p195 = scmp.eq.s32.totalorder %s20, 15
    %p196 = por %p194, %p195
    %p197 = scmp.ne.s32.totalorder %s188, %s189
    %p198 = scmp.eq.s32.totalorder %s20, 0
    %p199 = por %p197, %p198
    %p200 = scmp.ne.s32.totalorder %s188, %s189
    %p201 = scmp.eq.s32.totalorder %s21, 15
    %p202 = por %p200, %p201
    %p204 = scmp.ne.s32.totalorder %s189, %s203
    %p205 = scmp.eq.s32.totalorder %s21, 0
    %p206 = por %p204, %p205
    %s208 = sadd.s32 %s207, 1
    %p211 = scmp.eq.s32.totalorder %s15, 15
    %p212 = scmp.ne.s32.totalorder %s207, %s209
    %p213 = scmp.eq.s32.totalorder %s15, 0
    %p214 = por %p212, %p213
    %p215 = scmp.ne.s32.totalorder %s207, %s209
    %p216 = scmp.eq.s32.totalorder %s20, 15
    %p217 = por %p215, %p216
    %p218 = scmp.ne.s32.totalorder %s209, %s210
    %p219 = scmp.eq.s32.totalorder %s20, 0
    %p220 = por %p218, %p219
    %p221 = scmp.ne.s32.totalorder %s209, %s210
    %p222 = scmp.eq.s32.totalorder %s21, 15
    %p223 = por %p221, %p222
    %p225 = scmp.ne.s32.totalorder %s210, %s224
    %p226 = scmp.eq.s32.totalorder %s21, 0
    %p227 = por %p225, %p226
    %s229 = sadd.s32 %s228, 1
    %p232 = scmp.eq.s32.totalorder %s15, 15
    %p233 = scmp.ne.s32.totalorder %s228, %s230
    %p234 = scmp.eq.s32.totalorder %s15, 0
    %p235 = por %p233, %p234
    %p236 = scmp.ne.s32.totalorder %s228, %s230
    %p237 = scmp.eq.s32.totalorder %s20, 15
    %p238 = por %p236, %p237
    %p239 = scmp.ne.s32.totalorder %s230, %s231
    %p240 = scmp.eq.s32.totalorder %s20, 0
    %p241 = por %p239, %p240
    %p242 = scmp.ne.s32.totalorder %s230, %s231
    %p243 = scmp.eq.s32.totalorder %s21, 15
    %p244 = por %p242, %p243
    %p246 = scmp.ne.s32.totalorder %s231, %s245
    %p247 = scmp.eq.s32.totalorder %s21, 0
    %p248 = por %p246, %p247
    %s249 = ssub.s32 %s22, %s34
    %p250 = scmp.eq.s32.totalorder %s249, 0
    %s252 = sadd.s32 %s251, 1
    %s253 = scalar_select %p250, %s251, %s252
    %p256 = pneg %p250
    %p257 = scmp.eq.s32.totalorder %s15, 15
    %p258 = por %p256, %p257
    %p259 = scmp.ne.s32.totalorder %s251, %s254
    %p260 = scmp.eq.s32.totalorder %s15, 0
    %p261 = por %p259, %p260
    %p262 = scmp.ne.s32.totalorder %s251, %s254
    %p263 = scmp.eq.s32.totalorder %s20, 15
    %p264 = por %p262, %p263
    %p265 = scmp.ne.s32.totalorder %s254, %s255
    %p266 = scmp.eq.s32.totalorder %s20, 0
    %p267 = por %p265, %p266
    %p268 = scmp.ne.s32.totalorder %s254, %s255
    %p269 = scmp.eq.s32.totalorder %s21, 15
    %p270 = por %p268, %p269
    %p272 = scmp.ne.s32.totalorder %s255, %s271
    %p273 = scmp.eq.s32.totalorder %s21, 0
    %p274 = por %p272, %p273
    %p275 = scmp.le.s32.totalorder 1, %s15
    %p276 = scmp.lt.s32.totalorder %s15, 17
    %p277 = pnand %p275, %p276
    %p278 = pneg %p277
    // Predicated region
    $region9: #{casrel_forward.1} parent=5 // pred_check
      _
    $region10: #{casrel_forward.1} parent=5 // pred_check_branch
      %280 = sbr.rel (%p277) target = $region12
    $region11: #{casrel_forward.1} parent=5 // pred_region
      %s281 = ssub.s32 %s15, 1
      // Predicated region
      $region13: #{casrel_forward.1} parent=11 // pred_check
        %p282 = pneg %p178
      $region14: #{casrel_forward.1} parent=11 // pred_check_branch
        %284 = sbr.rel (%p282) target = $region16
      $region15: #{casrel_forward.1} parent=11 // pred_region
        _
      $region16: #{casrel_forward.1} parent=11 // pred_fallthru
        _
      // Predicated region
      $region17: #{casrel_forward.1} parent=11 // pred_check
        %p285 = pneg %p199
      $region18: #{casrel_forward.1} parent=11 // pred_check_branch
        %287 = sbr.rel (%p285) target = $region20
      $region19: #{casrel_forward.1} parent=11 // pred_region
        _
      $region20: #{casrel_forward.1} parent=11 // pred_fallthru
        _
      // Predicated region
      $region21: #{casrel_forward.1} parent=11 // pred_check
        %p288 = pneg %p220
      $region22: #{casrel_forward.1} parent=11 // pred_check_branch
        %290 = sbr.rel (%p288) target = $region24
      $region23: #{casrel_forward.1} parent=11 // pred_region
        _
      $region24: #{casrel_forward.1} parent=11 // pred_fallthru
        _
      // Predicated region
      $region25: #{casrel_forward.1} parent=11 // pred_check
        %p291 = pneg %p241
      $region26: #{casrel_forward.1} parent=11 // pred_check_branch
        %293 = sbr.rel (%p291) target = $region28
      $region27: #{casrel_forward.1} parent=11 // pred_region
        _
      $region28: #{casrel_forward.1} parent=11 // pred_fallthru
        _
    $region12: #{casrel_forward.1} parent=5 // pred_fallthru
      _
    %p294 = scmp.lt.s32.totalorder %s15, 16
    // Predicated region
    $region29: #{casrel_forward.1} parent=5 // pred_check
      %p295 = pneg %p294
    $region30: #{casrel_forward.1} parent=5 // pred_check_branch
      %297 = sbr.rel (%p295) target = $region32
    $region31: #{casrel_forward.1} parent=5 // pred_region
      // Predicated region
      $region33: #{casrel_forward.1} parent=31 // pred_check
        %p298 = pneg %p47
      $region34: #{casrel_forward.1} parent=31 // pred_check_branch
        %300 = sbr.rel (%p298) target = $region36
      $region35: #{casrel_forward.1} parent=31 // pred_region
        %p301 = scmp.lt.s32.totalorder %s22, 1
        %s302 = scalar_select %p301, %s22, 1
        %s303 = smul.addr %s302, 8
        %s304 = scalar_lea.vmem %s0, %s303
      $region36: #{casrel_forward.1} parent=31 // pred_fallthru
        _
      // Predicated region
      $region37: #{casrel_forward.1} parent=31 // pred_check
        %p305 = pneg %p73
      $region38: #{casrel_forward.1} parent=31 // pred_check_branch
        %307 = sbr.rel (%p305) target = $region40
      $region39: #{casrel_forward.1} parent=31 // pred_region
        %p308 = scmp.lt.s32.totalorder %s22, 1
        %s309 = scalar_select %p308, %s22, 1
        %s310 = scalar_lea.vmem %s1, %s309
      $region40: #{casrel_forward.1} parent=31 // pred_fallthru
        _
      // Predicated region
      $region41: #{casrel_forward.1} parent=31 // pred_check
        %p311 = pneg %p99
      $region42: #{casrel_forward.1} parent=31 // pred_check_branch
        %313 = sbr.rel (%p311) target = $region44
      $region43: #{casrel_forward.1} parent=31 // pred_region
        %p314 = scmp.lt.s32.totalorder %s23, 7
        %s315 = scalar_select %p314, %s23, 7
        %s316 = smul.addr %s315, 12
        %s317 = smul.addr %s316, 4
        %s318 = scalar_lea.vmem %s2, %s317
      $region44: #{casrel_forward.1} parent=31 // pred_fallthru
        _
      // Predicated region
      $region45: #{casrel_forward.1} parent=31 // pred_check
        %p319 = pneg %p125
      $region46: #{casrel_forward.1} parent=31 // pred_check_branch
        %321 = sbr.rel (%p319) target = $region48
      $region47: #{casrel_forward.1} parent=31 // pred_region
        %p322 = scmp.lt.s32.totalorder %s23, 7
        %s323 = scalar_select %p322, %s23, 7
        %s324 = smul.addr %s323, 3
        %s325 = scalar_lea.vmem %s3, %s324
      $region48: #{casrel_forward.1} parent=31 // pred_fallthru
        _
      // Predicated region
      $region49: #{casrel_forward.1} parent=31 // pred_check
        %p326 = pneg %p151
      $region50: #{casrel_forward.1} parent=31 // pred_check_branch
        %328 = sbr.rel (%p326) target = $region52
      $region51: #{casrel_forward.1} parent=31 // pred_region
        %p329 = scmp.lt.s32.totalorder %s23, 7
        %s330 = scalar_select %p329, %s23, 7
        %s331 = smul.addr %s330, 16
        %s332 = smul.addr %s331, 4
        %s333 = scalar_lea.vmem %s4, %s332
      $region52: #{casrel_forward.1} parent=31 // pred_fallthru
        _
    $region32: #{casrel_forward.1} parent=5 // pred_fallthru
      _
    %p334 = scmp.le.s32.totalorder 1, %s15
    %p335 = scmp.lt.s32.totalorder %s15, 17
    %p336 = pnand %p334, %p335
    %p337 = pneg %p336
    // Predicated region
    $region53: #{casrel_forward.1} parent=5 // pred_check
      _
    $region54: #{casrel_forward.1} parent=5 // pred_check_branch
      %339 = sbr.rel (%p336) target = $region56
    $region55: #{casrel_forward.1} parent=5 // pred_region
      %s340 = ssub.s32 %s15, 1
      %p341 = scmp.lt.s32.totalorder %s24, 1
      %s342 = scalar_select %p341, %s24, 1
      %s343 = smul.addr %s342, 8
      %s344 = scalar_lea.vmem %s0, %s343
      %p345 = pneg %p53
      %p346 = pneg %p50
      %p347 = scmp.lt.s32.totalorder %s24, 1
      %s348 = scalar_select %p347, %s24, 1
      %s349 = scalar_lea.vmem %s1, %s348
      %p350 = pneg %p79
      %p351 = pneg %p76
      %p352 = scmp.lt.s32.totalorder %s25, 7
      %s353 = scalar_select %p352, %s25, 7
      %s354 = smul.addr %s353, 12
      %s355 = smul.addr %s354, 4
      %s356 = scalar_lea.vmem %s2, %s355
      %p357 = pneg %p105
      %p358 = pneg %p102
      %p359 = scmp.lt.s32.totalorder %s25, 7
      %s360 = scalar_select %p359, %s25, 7
      %s361 = smul.addr %s360, 3
      %s362 = scalar_lea.vmem %s3, %s361
      %p363 = pneg %p131
      %p364 = pneg %p128
      %p365 = scmp.lt.s32.totalorder %s25, 7
      %s366 = scalar_select %p365, %s25, 7
      %s367 = smul.addr %s366, 16
      %s368 = smul.addr %s367, 4
      %s369 = scalar_lea.vmem %s4, %s368
      %p370 = pneg %p157
      %p371 = pneg %p154
      %p372 = pneg %p178
      %p373 = pneg %p175
      %p374 = pneg %p199
      %p375 = pneg %p196
      %p376 = pneg %p220
      %p377 = pneg %p217
      %p378 = pneg %p241
      %p379 = pneg %p238
      %p380 = pneg %p267
      %p381 = pneg %p264
      %p382 = scmp.lt.s32.totalorder %s24, 1
      %s383 = scalar_select %p382, %s24, 1
      %s384 = smul.addr %s383, 8
      %s385 = scalar_lea.vmem %s9, %s384
      %p386 = scmp.lt.s32.totalorder %s24, 1
      %s387 = scalar_select %p386, %s24, 1
      %s388 = smul.addr %s387, 8
      %s389 = scalar_lea.vmem %s0, %s388
      %p390 = scmp.lt.s32.totalorder %s24, 1
      %s391 = scalar_select %p390, %s24, 1
      %s392 = scalar_lea.vmem %s1, %s391
      %p393 = scmp.lt.s32.totalorder %s25, 7
      %s394 = scalar_select %p393, %s25, 7
      %s395 = smul.addr %s394, 12
      %s396 = smul.addr %s395, 4
      %s397 = scalar_lea.vmem %s2, %s396
      %p398 = scmp.lt.s32.totalorder %s25, 7
      %s399 = scalar_select %p398, %s25, 7
      %s400 = smul.addr %s399, 3
      %s401 = scalar_lea.vmem %s3, %s400
      %p402 = scmp.lt.s32.totalorder %s25, 7
      %s403 = scalar_select %p402, %s25, 7
      %s404 = smul.addr %s403, 16
      %s405 = smul.addr %s404, 4
      %s406 = scalar_lea.vmem %s4, %s405
      %p407 = scmp.lt.s32.totalorder %s24, 1
      %s408 = scalar_select %p407, %s24, 1
      %s409 = smul.addr %s408, 8
      %s410 = scalar_lea.vmem %s9, %s409
      %p412 = scmp.eq.s32.totalorder %s25, 0
      // Predicated region
      $region57: #{casrel_forward.1} parent=55 // pred_check
        %p413 = pneg %p412
      $region58: #{casrel_forward.1} parent=55 // pred_check_branch
        %415 = sbr.rel (%p413) target = $region60
      $region59: #{casrel_forward.1} parent=55 // pred_region
        %vm416 = vcmask 261120
        %417 = vst.msk [vmem:[#allocation3] sm:$0xff] %vm416, 0.0
        %v418 = vld [vmem:[%s389] sm:$0xff]
        %v419 = vpack.c.bf16 %v418, %v418
        %v420 = vld [vmem:[%s392] sm:$0x1]
        %v421 = vpack.c.bf16 %v420, %v420
        %vm422 = vcmask 64512
        %v424 = vsel %vm422, %v421, 0
        %vm426 = vcmask 1043456
        %v428 = vsel %vm426, %v419, 0
        %430 = vmatpush.bf16.msra.mxu0 0
        %431 = vmatpush.bf16.msra.mxu0 0
        %432 = vmatpush.bf16.msra.mxu0 0
        %433 = vmatpush.bf16.msra.mxu0 0
        %434 = vmatpush.bf16.msra.mxu0 0
        %435 = vmatpush.bf16.msra.mxu0 0
        %436 = vmatpush.bf16.msra.mxu0 0
        %437 = vmatpush.bf16.msra.mxu0 %v428
        %438 = vmatmul.bf16.gmra.mxu0 %v424
        %v439 = vpop.f32.mrf.mxu0
        %v440 = vadd.f32 0.0, %v439
        %v441 = vpop.f32.mrf.mxu0
        %442 = vdwg.mxu0
        %v443 = vperm.slane %v440, 0
        %v444 = vadd.f32 %v418, %v443
        %v445 = vpack.c.bf16 %v444, %v444
        %vm446 = vcmask 257024
        %447 = vst.msk [vmem:[#allocation2] sm:$0xf] %vm446, %v445
      $region60: #{casrel_forward.1} parent=55 // pred_fallthru
        _
      %v448 = vld [vmem:[#allocation2] sm:$0xf]
      %v449 = vld [vmem:[%s397] sm:$0xff]
      %v450 = vld [vmem:[%s397 + $0x8] sm:$0xf]
      %v451 = vld [vmem:[%s397 + $0xc] sm:$0xff]
      %v452 = vld [vmem:[%s397 + $0x14] sm:$0xf]
      %v453 = vld [vmem:[%s397 + $0x18] sm:$0xff]
      %v454 = vld [vmem:[%s397 + $0x20] sm:$0xf]
      %v455 = vld [vmem:[%s397 + $0x24] sm:$0xff]
      %v456 = vld [vmem:[%s397 + $0x2c] sm:$0xf]
      %v457 = vld [vmem:[%s401] sm:$0x7]
      %v459 = vperm.slane %v457, 0
      %v460 = vperm.slane %v457, 1
      %v461 = vperm.slane %v457, 2
      %v473 = vunpack.c.l.b16 %v449
      %v474 = vunpack.c.h.b16 %v449
      %v475 = vunpack.c.l.b16 %v450
      %v476 = vunpack.c.l.b16 %v451
      %v477 = vunpack.c.h.b16 %v451
      %v478 = vunpack.c.l.b16 %v452
      %v479 = vunpack.c.l.b16 %v453
      %v480 = vunpack.c.h.b16 %v453
      %v481 = vunpack.c.l.b16 %v454
      %v482 = vunpack.c.l.b16 %v455
      %v483 = vunpack.c.h.b16 %v455
      %v484 = vunpack.c.l.b16 %v456
      %v485 = vpack.c.b16 %v476, %v473
      %v486 = vpack.c.b16 %v477, %v474
      %v487 = vpack.c.b16 %v478, %v475
      %v488 = vpack.c.b16 %v482, %v479
      %v489 = vpack.c.b16 %v483, %v480
      %v490 = vpack.c.b16 %v484, %v481
      %vm497 = vcmask 261120
      %v499 = vsel %vm497, %v448, 0
      %501 = vmatpush.bf16.msra.mxu0 0
      %502 = vmatpush.bf16.msra.mxu0 0
      %503 = vmatpush.bf16.msra.mxu0 0
      %504 = vmatpush.bf16.msra.mxu0 0
      %505 = vmatpush.bf16.msra.mxu0 0
      %506 = vmatpush.bf16.msra.mxu0 0
      %507 = vmatpush.bf16.msra.mxu0 %v488
      %508 = vmatpush.bf16.msra.mxu0 %v485
      %509 = vmatmul.bf16.gmra.mxu0 %v499
      %v510 = vpop.f32.mrf.mxu0
      %v511 = vadd.f32 %v459, %v510
      %v512 = vpop.f32.mrf.mxu0
      %513 = vdwg.mxu0
      %514 = vmatpush.bf16.msra.mxu0 0
      %515 = vmatpush.bf16.msra.mxu0 0
      %516 = vmatpush.bf16.msra.mxu0 0
      %517 = vmatpush.bf16.msra.mxu0 0
      %518 = vmatpush.bf16.msra.mxu0 0
      %519 = vmatpush.bf16.msra.mxu0 0
      %520 = vmatpush.bf16.msra.mxu0 %v489
      %521 = vmatpush.bf16.msra.mxu0 %v486
      %522 = vmatmul.bf16.gmra.mxu0 %v499
      %v523 = vpop.f32.mrf.mxu0
      %v524 = vadd.f32 %v460, %v523
      %v525 = vpop.f32.mrf.mxu0
      %526 = vdwg.mxu0
      %527 = vmatpush.bf16.msra.mxu0 0
      %528 = vmatpush.bf16.msra.mxu0 0
      %529 = vmatpush.bf16.msra.mxu0 0
      %530 = vmatpush.bf16.msra.mxu0 0
      %531 = vmatpush.bf16.msra.mxu0 0
      %532 = vmatpush.bf16.msra.mxu0 0
      %533 = vmatpush.bf16.msra.mxu0 %v490
      %534 = vmatpush.bf16.msra.mxu0 %v487
      %535 = vmatmul.bf16.gmra.mxu0 %v499
      %v536 = vpop.f32.mrf.mxu0
      %v537 = vadd.f32 %v461, %v536
      %v538 = vpop.f32.mrf.mxu0
      %539 = vdwg.mxu0
      %v540 = vpack.c.bf16 %v524, %v511
      %v541 = vpack.c.bf16 %v537, %v537
      %v543 = vunpack.c.h.b16 %v540
      %v544 = vpack.c.b16 %v543, %v543
      %546 = vmatpush.bf16.xpose.msra.mxu0 0
      %547 = vmatpush.bf16.xpose.msra.mxu0 0
      %548 = vmatpush.bf16.xpose.msra.mxu0 0
      %549 = vmatpush.bf16.xpose.msra.mxu0 0
      %550 = vmatpush.bf16.xpose.msra.mxu0 0
      %551 = vmatpush.bf16.xpose.msra.mxu0 0
      %552 = vmatpush.bf16.xpose.msra.mxu0 0
      %553 = vmatpush.bf16.xpose.msra.mxu0 %v544
      %554 = vmatmul.bf16.gmra.mxu0 %v540
      %v555 = vpop.f32.mrf.mxu0
      %v556 = vadd.f32 0.0, %v555
      %v557 = vpop.f32.mrf.mxu0
      %558 = vdwg.mxu0
      %v559 = vmul.f32 %v556, 0.17677669
      %vm560 = vcmask 64512
      %v561 = vsel %vm560, %v559, -inf
      %562 = vmax.xlane.f32.xlu0 %v561
      %v563 = vpop.xlane.xlu0 %562
      %v564 = vsub.f32 %v559, %v563
      %v565 = vmul.f32 %v564, 1.442695
      %v566 = vpow.pop %v565
      %v567 = vsel %vm560, %v566, 0.0
      %568 = vadd.xlane.f32.xlu0 %v567
      %v569 = vpop.xlane.xlu0 %568
      %v570 = vrcp.pop %v569
      %v571 = vmul.f32 %v566, %v570
      %v572 = vpack.c.bf16 %v571, %v571
      %v574 = vsel %vm560, %v572, 0
      %vm576 = vcmask 1043456
      %v578 = vsel %vm576, %v541, 0
      %580 = vmatpush.bf16.msra.mxu0 0
      %581 = vmatpush.bf16.msra.mxu0 0
      %582 = vmatpush.bf16.msra.mxu0 0
      %583 = vmatpush.bf16.msra.mxu0 0
      %584 = vmatpush.bf16.msra.mxu0 0
      %585 = vmatpush.bf16.msra.mxu0 0
      %586 = vmatpush.bf16.msra.mxu0 0
      %587 = vmatpush.bf16.msra.mxu0 %v578
      %588 = vmatmul.bf16.gmra.mxu0 %v574
      %v589 = vpop.f32.mrf.mxu0
      %v590 = vadd.f32 0.0, %v589
      %v591 = vpop.f32.mrf.mxu0
      %592 = vdwg.mxu0
      %v593 = vld [vmem:[#allocation3] sm:$0xff]
      %v594 = vpack.c.bf16 %v590, %v590
      %v595 = vld [vmem:[%s406] sm:$0xf]
      %v596 = vld [vmem:[%s406 + $0x4] sm:$0xf]
      %v597 = vld [vmem:[%s406 + $0x8] sm:$0xf]
      %v598 = vld [vmem:[%s406 + $0xc] sm:$0xf]
      %v599 = vld [vmem:[%s406 + $0x10] sm:$0xf]
      %v600 = vld [vmem:[%s406 + $0x14] sm:$0xf]
      %v601 = vld [vmem:[%s406 + $0x18] sm:$0xf]
      %v602 = vld [vmem:[%s406 + $0x1c] sm:$0xf]
      %v603 = vld [vmem:[%s406 + $0x20] sm:$0xf]
      %v604 = vld [vmem:[%s406 + $0x24] sm:$0xf]
      %v605 = vld [vmem:[%s406 + $0x28] sm:$0xf]
      %v606 = vld [vmem:[%s406 + $0x2c] sm:$0xf]
      %v607 = vld [vmem:[%s406 + $0x30] sm:$0xf]
      %v608 = vld [vmem:[%s406 + $0x34] sm:$0xf]
      %v609 = vld [vmem:[%s406 + $0x38] sm:$0xf]
      %v610 = vld [vmem:[%s406 + $0x3c] sm:$0xf]
      %v627 = vunpack.c.l.b16 %v595
      %v628 = vunpack.c.l.b16 %v596
      %v629 = vunpack.c.l.b16 %v597
      %v630 = vunpack.c.l.b16 %v598
      %v631 = vunpack.c.l.b16 %v599
      %v632 = vunpack.c.l.b16 %v600
      %v633 = vunpack.c.l.b16 %v601
      %v634 = vunpack.c.l.b16 %v602
      %v635 = vunpack.c.l.b16 %v603
      %v636 = vunpack.c.l.b16 %v604
      %v637 = vunpack.c.l.b16 %v605
      %v638 = vunpack.c.l.b16 %v606
      %v639 = vunpack.c.l.b16 %v607
      %v640 = vunpack.c.l.b16 %v608
      %v641 = vunpack.c.l.b16 %v609
      %v642 = vunpack.c.l.b16 %v610
      %v643 = vpack.c.b16 %v628, %v627
      %v644 = vpack.c.b16 %v630, %v629
      %v645 = vpack.c.b16 %v632, %v631
      %v646 = vpack.c.b16 %v634, %v633
      %v647 = vpack.c.b16 %v636, %v635
      %v648 = vpack.c.b16 %v638, %v637
      %v649 = vpack.c.b16 %v640, %v639
      %v650 = vpack.c.b16 %v642, %v641
      %659 = vmatpush.bf16.msra.mxu0 %v650
      %660 = vmatpush.bf16.msra.mxu0 %v649
      %661 = vmatpush.bf16.msra.mxu0 %v648
      %662 = vmatpush.bf16.msra.mxu0 %v647
      %663 = vmatpush.bf16.msra.mxu0 %v646
      %664 = vmatpush.bf16.msra.mxu0 %v645
      %665 = vmatpush.bf16.msra.mxu0 %v644
      %666 = vmatpush.bf16.msra.mxu0 %v643
      %667 = vmatmul.bf16.gmra.mxu0 %v594
      %v668 = vpop.f32.mrf.mxu0
      %v669 = vadd.f32 0.0, %v668
      %v670 = vpop.f32.mrf.mxu0
      %671 = vdwg.mxu0
      %v672 = vadd.f32 %v593, %v669
      %673 = vst.msk [vmem:[#allocation3] sm:$0xff] %vm497, %v672
      %p674 = scmp.eq.s32.totalorder %s25, 7
      // Predicated region
      $region61: #{casrel_forward.1} parent=55 // pred_check
        %p675 = pneg %p674
      $region62: #{casrel_forward.1} parent=55 // pred_check_branch
        %677 = sbr.rel (%p675) target = $region64
      $region63: #{casrel_forward.1} parent=55 // pred_region
        %v678 = vld [vmem:[#allocation3] sm:$0xff]
        %v679 = vld [vmem:[%s5] sm:$0x1]
        %v681 = vperm.slane %v679, 0
        %v683 = vadd.f32 %v678, %v681
        %v684 = vpack.c.bf16 %v683, %v683
        %v685 = vld [vmem:[%s389] sm:$0xff]
        %v686 = vpack.c.bf16 %v685, %v685
        %v687 = vld [vmem:[%s6] sm:$0xf]
        %v688 = vld [vmem:[%s6 + $0x4] sm:$0xf]
        %v689 = vld [vmem:[%s6 + $0x8] sm:$0xf]
        %v690 = vld [vmem:[%s6 + $0xc] sm:$0xf]
        %v691 = vld [vmem:[%s7] sm:$0xf]
        %v692 = vld [vmem:[%s7 + $0x4] sm:$0xf]
        %v693 = vld [vmem:[%s7 + $0x8] sm:$0xf]
        %v694 = vld [vmem:[%s7 + $0xc] sm:$0xf]
        %v699 = vunpack.c.l.b16 %v691
        %v700 = vunpack.c.l.b16 %v692
        %v701 = vunpack.c.l.b16 %v693
        %v702 = vunpack.c.l.b16 %v694
        %v703 = vpack.c.b16 %v700, %v699
        %v704 = vpack.c.b16 %v702, %v701
        %v708 = vsel %vm497, %v684, 0
        %710 = vmatpush.bf16.msra.mxu0 0
        %711 = vmatpush.bf16.msra.mxu0 0
        %712 = vmatpush.bf16.msra.mxu0 0
        %713 = vmatpush.bf16.msra.mxu0 0
        %714 = vmatpush.bf16.msra.mxu0 0
        %715 = vmatpush.bf16.msra.mxu0 0
        %716 = vmatpush.bf16.msra.mxu0 %v704
        %717 = vmatpush.bf16.msra.mxu0 %v703
        %718 = vmatmul.bf16.gmra.mxu0 %v708
        %v719 = vpop.f32.mrf.mxu0
        %v720 = vadd.f32 0.0, %v719
        %v721 = vpop.f32.mrf.mxu0
        %722 = vdwg.mxu0
        %v727 = vunpack.c.l.b16 %v687
        %v728 = vunpack.c.l.b16 %v688
        %v729 = vunpack.c.l.b16 %v689
        %v730 = vunpack.c.l.b16 %v690
        %v731 = vpack.c.b16 %v728, %v727
        %v732 = vpack.c.b16 %v730, %v729
        %v736 = vsel %vm497, %v686, 0
        %738 = vmatpush.bf16.msra.mxu0 0
        %739 = vmatpush.bf16.msra.mxu0 0
        %740 = vmatpush.bf16.msra.mxu0 0
        %741 = vmatpush.bf16.msra.mxu0 0
        %742 = vmatpush.bf16.msra.mxu0 0
        %743 = vmatpush.bf16.msra.mxu0 0
        %744 = vmatpush.bf16.msra.mxu0 %v732
        %745 = vmatpush.bf16.msra.mxu0 %v731
        %746 = vmatmul.bf16.gmra.mxu0 %v736
        %v747 = vpop.f32.mrf.mxu0
        %v748 = vadd.f32 %v720, %v747
        %v749 = vpop.f32.mrf.mxu0
        %750 = vdwg.mxu0
        %v751 = vld [vmem:[%s8] sm:$0x1]
        %v753 = vperm.slane %v751, 0
        %v755 = vadd.f32 %v748, %v753
        %v756 = vsub.f32 0.0, %v755
        %v757 = vmul.f32 %v756, 1.442695
        %v758 = vpow.pop %v757
        %v759 = vadd.f32 %v758, 1.0
        %v760 = vrcp.pop %v759
        %v761 = vmul.f32 %v759, %v760
        %v762 = vsub.f32 1.0, %v761
        %v763 = vmul.f32 %v760, %v762
        %v764 = vadd.f32 %v760, %v763
        %vm765 = vweird.f32 %v759
        %vm766 = vweird.f32 %v760
        %vm767 = vmor %vm765, %vm766
        %v768 = vsel %vm767, %v760, %v764
        %v769 = vand.u32 2147483647, %v759
        %vm770 = vcmp.eq.f32.partialorder %v769, 8.507059e+37
        %v771 = vand.u32 %v759, 2147483648
        %v772 = vor.u32 1.1754944e-38, %v771
        %v773 = vsel %vm770, %v772, %v768
        %774 = vst [vmem:[%s410] sm:$0xff] %v773
      $region64: #{casrel_forward.1} parent=55 // pred_fallthru
        _
      %p775 = scmp.lt.s32.totalorder %s24, 1
      %s776 = scalar_select %p775, %s24, 1
      %s777 = smul.addr %s776, 8
      %s778 = scalar_lea.vmem %s9, %s777
      // Predicated region
      $region65: #{casrel_forward.1} parent=55 // pred_check
        %p779 = pneg %p264
      $region66: #{casrel_forward.1} parent=55 // pred_check_branch
        %781 = sbr.rel (%p779) target = $region68
      $region67: #{casrel_forward.1} parent=55 // pred_region
        _
      $region68: #{casrel_forward.1} parent=55 // pred_fallthru
        _
    $region56: #{casrel_forward.1} parent=5 // pred_fallthru
      _
    %p782 = scmp.le.s32.totalorder 2, %s15
    // Predicated region
    $region69: #{casrel_forward.1} parent=5 // pred_check
      %p783 = pneg %p782
    $region70: #{casrel_forward.1} parent=5 // pred_check_branch
      %785 = sbr.rel (%p783) target = $region72
    $region71: #{casrel_forward.1} parent=5 // pred_region
      %s786 = ssub.s32 %s15, 2
      // Predicated region
      $region73: #{casrel_forward.1} parent=71 // pred_check
        %p787 = pneg %p270
      $region74: #{casrel_forward.1} parent=71 // pred_check_branch
        %789 = sbr.rel (%p787) target = $region76
      $region75: #{casrel_forward.1} parent=71 // pred_region
        %p790 = scmp.lt.s32.totalorder %s26, 1
        %s791 = scalar_select %p790, %s26, 1
        %s792 = smul.addr %s791, 8
        %s793 = scalar_lea.vmem %s9, %s792
      $region76: #{casrel_forward.1} parent=71 // pred_fallthru
        _
    $region72: #{casrel_forward.1} parent=5 // pred_fallthru
      _
  $region6: #{casrel_forward.1} parent=0 // loop_footer
    %s19 = sadd.s32 1, %s15
  $region7: #{casrel_forward.1} parent=0 // loop_footer_branch
    %14 = sbr.rel target = $region3
  $region8: #{casrel_forward.1} parent=0 // loop_exit
    _

</llo_original>
